<compile_context>
chip_gen: v5e
topology: v5e:2x2
jax: 0.10.0
libtpu: 0.0.40
codegen_flags: <defaults>
</compile_context>

<pallas_src>
import functools

import jax
import jax.numpy as jnp
from jax.experimental import pallas as pl
from jax.experimental.pallas import tpu as pltpu


def _layer_norm(x, gamma, beta, eps=1e-5):
    # x: (N, F) f32; normalize over last dim (== nn.LayerNorm(filter_size)).
    mean = jnp.mean(x, axis=-1, keepdims=True)
    var = jnp.mean((x - mean) ** 2, axis=-1, keepdims=True)
    inv = jax.lax.rsqrt(var + eps)
    return (x - mean) * inv * gamma + beta


def _conv3_fused(x, is_first, is_last, w_cat, b):
    """Conv1d(kernel=3, padding=1) over time as ONE matmul.

    x:        (B*T, Cin) f32, time flattened over batch.
    is_first: (B*T, 1) bool, True at t==0 of each example.
    is_last:  (B*T, 1) bool, True at t==T-1 of each example.
    w_cat:    (3*Cin, Cout) bf16 == [w_tap0; w_tap1; w_tap2] stacked along Cin.
    b:        (1, Cout) f32.
    """
    n = x.shape[0]
    # Shifted copies via XLU rotations; mask the rows that wrapped across an
    # example boundary (this also realizes the conv's zero padding).
    x_prev = jnp.where(is_first, 0.0, pltpu.roll(x, shift=1, axis=0))
    x_next = jnp.where(is_last, 0.0, pltpu.roll(x, shift=n - 1, axis=0))  # -1
    x_cat = jnp.concatenate([x_prev, x, x_next], axis=-1)        # (B*T, 3*Cin)
    y = jnp.dot(x_cat.astype(w_cat.dtype), w_cat,
                preferred_element_type=jnp.float32)              # (B*T, Cout)
    return y + b


def pitch_predictor_kernel(x_ref,
                           w1_ref, b1_ref, g1_ref, be1_ref,
                           w2_ref, b2_ref, g2_ref, be2_ref,
                           wl_ref, bl_ref,
                           o_ref, *, seq_len):
    x = x_ref[...].astype(jnp.float32)                           # (B*T, Din)
    bt = x.shape[0]

    # Per-example time position; computed once, reused by both conv layers.
    t_idx = jax.lax.broadcasted_iota(jnp.int32, (bt, 1), 0) % seq_len
    is_first = t_idx == 0
    is_last = t_idx == seq_len - 1

    # Conv1d(Din->F, k=3, pad=1) + LayerNorm(F) + ReLU (Dropout = eval identity)
    h = _conv3_fused(x, is_first, is_last, w1_ref[...], b1_ref[...])
    h = _layer_norm(h, g1_ref[...], be1_ref[...])
    h = jnp.maximum(h, 0.0)

    # Conv1d(F->F, k=3, pad=1) + LayerNorm(F) + ReLU
    h = _conv3_fused(h, is_first, is_last, w2_ref[...], b2_ref[...])
    h = _layer_norm(h, g2_ref[...], be2_ref[...])
    h = jnp.maximum(h, 0.0)

    # Linear(F->1) + ReLU computed as a row vector:
    # (1, F) . (B*T, F)^T -> (1, B*T); single lane-dense output store.
    out = jax.lax.dot_general(wl_ref[...], h, (((1,), (1,)), ((), ())),
                              preferred_element_type=jnp.float32)
    out = jnp.maximum(out + bl_ref[...], 0.0)                    # (1, B*T)
    o_ref[...] = out.astype(o_ref.dtype)


def pitch_predictor_forward(x, params):
    """x: (B, T, Din) float32.  Returns the module's eval-mode output."""
    B, T, Din = x.shape
    F_ = params["w1"].shape[2]
    BT = B * T

    # Fold the 3 conv taps into one K=3*Cin matmul (trace-time reshape) and
    # feed bf16 to the MXU (halves weight bytes; f32 accumulation in-kernel).
    w1c = params["w1"].reshape(3 * Din, F_).astype(jnp.bfloat16)
    w2c = params["w2"].reshape(3 * F_, F_).astype(jnp.bfloat16)

    kernel = functools.partial(pitch_predictor_kernel, seq_len=T)
    out = pl.pallas_call(
        kernel,
        out_shape=jax.ShapeDtypeStruct((1, BT), jnp.float32),
    )(x.reshape(BT, Din),
      w1c, params["b1"], params["g1"], params["be1"],
      w2c, params["b2"], params["g2"], params["be2"],
      params["wl"], params["bl"])

    out = out.reshape(B, T)
    # torch: out.squeeze(); if not self.training: out = out.unsqueeze(0)
    out = jnp.squeeze(out)[None]
    return out


def init_params(key, encoder_dim, filter_size, kernel_size):
    assert kernel_size == 3, "padding=1 in the module implies kernel_size=3"
    ks = jax.random.split(key, 6)
    scale1 = 1.0 / jnp.sqrt(encoder_dim * kernel_size)
    scale2 = 1.0 / jnp.sqrt(filter_size * kernel_size)
    scalel = 1.0 / jnp.sqrt(filter_size)
    return {
        # Conv weights stored as (k, Cin, Cout); PyTorch Conv1d weight is
        # (Cout, Cin, k) -> permute(2, 1, 0) to import.
        "w1": jax.random.uniform(ks[0], (kernel_size, encoder_dim, filter_size),
                                 jnp.float32, -scale1, scale1),
        "b1": jax.random.uniform(ks[1], (1, filter_size), jnp.float32,
                                 -scale1, scale1),
        "g1": jnp.ones((1, filter_size), jnp.float32),
        "be1": jnp.zeros((1, filter_size), jnp.float32),
        "w2": jax.random.uniform(ks[2], (kernel_size, filter_size, filter_size),
                                 jnp.float32, -scale2, scale2),
        "b2": jax.random.uniform(ks[3], (1, filter_size), jnp.float32,
                                 -scale2, scale2),
        "g2": jnp.ones((1, filter_size), jnp.float32),
        "be2": jnp.zeros((1, filter_size), jnp.float32),
        # Linear(F -> 1): PyTorch weight (1, F) stored directly as a row.
        "wl": jax.random.uniform(ks[4], (1, filter_size), jnp.float32,
                                 -scalel, scalel),
        "bl": jax.random.uniform(ks[5], (1, 1), jnp.float32, -scalel, scalel),
    }


if __name__ == "__main__":
    # model_config: encoder_dim=32, duration_predictor_filter_size=32,
    # duration_predictor_kernel_size=3, variance_dropout (identity in eval).
    encoder_dim = 32
    filter_size = 32
    kernel_size = 3
    B, T = 2, 8

    key = jax.random.PRNGKey(0)
    kx, kp = jax.random.split(key)
    x = jax.random.normal(kx, (B, T, encoder_dim), jnp.float32)
    params = init_params(kp, encoder_dim, filter_size, kernel_size)

    out = pitch_predictor_forward(x, params)
    out = jax.block_until_ready(out)
    assert out.shape == (1, B, T), out.shape
    print("KERNEL_OK")
</pallas_src>

<mosaic_0001>
module attributes {stable_mosaic.version = 11 : i64} {
  func.func @pitch_predictor_kernel(%arg0: memref<16x32xf32, #tpu.memory_space<vmem>>, %arg1: memref<96x32xbf16, #tpu.memory_space<vmem>>, %arg2: memref<1x32xf32, #tpu.memory_space<vmem>>, %arg3: memref<1x32xf32, #tpu.memory_space<vmem>>, %arg4: memref<1x32xf32, #tpu.memory_space<vmem>>, %arg5: memref<96x32xbf16, #tpu.memory_space<vmem>>, %arg6: memref<1x32xf32, #tpu.memory_space<vmem>>, %arg7: memref<1x32xf32, #tpu.memory_space<vmem>>, %arg8: memref<1x32xf32, #tpu.memory_space<vmem>>, %arg9: memref<1x32xf32, #tpu.memory_space<vmem>>, %arg10: memref<1x1xf32, #tpu.memory_space<vmem>>, %arg11: memref<1x16xf32, #tpu.memory_space<vmem>>) attributes {dimension_semantics = [], scalar_prefetch = 0 : i64, scratch_operands = 0 : i64, tpu.core_type = #tpu.core_type<tc>} {
    %c0 = arith.constant 0 : index
    %c0_0 = arith.constant 0 : index
    %0 = vector.load %arg0[%c0, %c0_0] : memref<16x32xf32, #tpu.memory_space<vmem>>, vector<16x32xf32>
    %1 = tpu.iota {dimensions = array<i32: 0>} : vector<16x1xi32>
    %c8_i32 = arith.constant 8 : i32
    %c0_i32 = arith.constant 0 : i32
    %2 = arith.cmpi eq, %c8_i32, %c0_i32 : i32
    %c1_i32 = arith.constant 1 : i32
    %3 = arith.select %2, %c1_i32, %c8_i32 : i32
    %4 = vector.broadcast %3 : i32 to vector<16x1xi32>
    %5 = arith.remsi %1, %4 : vector<16x1xi32>
    %c0_i32_1 = arith.constant 0 : i32
    %6 = vector.broadcast %c0_i32_1 : i32 to vector<16x1xi32>
    %7 = arith.cmpi ne, %5, %6 : vector<16x1xi32>
    %c0_i32_2 = arith.constant 0 : i32
    %8 = vector.broadcast %c0_i32_2 : i32 to vector<16x1xi32>
    %9 = arith.cmpi slt, %5, %8 : vector<16x1xi32>
    %c0_i32_3 = arith.constant 0 : i32
    %10 = arith.cmpi slt, %3, %c0_i32_3 : i32
    %11 = vector.broadcast %10 : i1 to vector<16x1xi1>
    %12 = vector.broadcast %11 : vector<16x1xi1> to vector<16x1xi1>
    %13 = arith.xori %9, %12 : vector<16x1xi1>
    %14 = arith.andi %13, %7 : vector<16x1xi1>
    %15 = vector.broadcast %3 : i32 to vector<16x1xi32>
    %16 = arith.addi %5, %15 : vector<16x1xi32>
    %17 = arith.select %14, %16, %5 : vector<16x1xi1>, vector<16x1xi32>
    %c0_i32_4 = arith.constant 0 : i32
    %18 = vector.broadcast %c0_i32_4 : i32 to vector<16x1xi32>
    %19 = arith.cmpi eq, %17, %18 : vector<16x1xi32>
    %c7_i32 = arith.constant 7 : i32
    %20 = vector.broadcast %c7_i32 : i32 to vector<16x1xi32>
    %21 = arith.cmpi eq, %17, %20 : vector<16x1xi32>
    %c0_5 = arith.constant 0 : index
    %c0_6 = arith.constant 0 : index
    %22 = vector.load %arg1[%c0_5, %c0_6] : memref<96x32xbf16, #tpu.memory_space<vmem>>, vector<96x32xbf16>
    %c0_7 = arith.constant 0 : index
    %c0_8 = arith.constant 0 : index
    %23 = vector.load %arg2[%c0_7, %c0_8] : memref<1x32xf32, #tpu.memory_space<vmem>>, vector<1x32xf32>
    %c1_i32_9 = arith.constant 1 : i32
    %24 = tpu.dynamic_rotate %0 by %c1_i32_9 dim 0 : vector<16x32xf32>, i32 -> vector<16x32xf32>
    %cst = arith.constant 0.000000e+00 : f32
    %25 = vector.shape_cast %19 : vector<16x1xi1> to vector<16x1xi1>
    %26 = vector.broadcast %25 : vector<16x1xi1> to vector<16x32xi1>
    %27 = vector.broadcast %cst : f32 to vector<16x32xf32>
    %28 = arith.select %26, %27, %24 : vector<16x32xi1>, vector<16x32xf32>
    %c15_i32 = arith.constant 15 : i32
    %29 = tpu.dynamic_rotate %0 by %c15_i32 dim 0 : vector<16x32xf32>, i32 -> vector<16x32xf32>
    %cst_10 = arith.constant 0.000000e+00 : f32
    %30 = vector.shape_cast %21 : vector<16x1xi1> to vector<16x1xi1>
    %31 = vector.broadcast %30 : vector<16x1xi1> to vector<16x32xi1>
    %32 = vector.broadcast %cst_10 : f32 to vector<16x32xf32>
    %33 = arith.select %31, %32, %29 : vector<16x32xi1>, vector<16x32xf32>
    %34 = tpu.concatenate %28, %0, %33 in 1 : vector<16x32xf32>, vector<16x32xf32>, vector<16x32xf32> -> vector<16x96xf32>
    %35 = arith.truncf %34 : vector<16x96xf32> to vector<16x96xbf16>
    %cst_11 = arith.constant dense<0.000000e+00> : vector<16x32xf32>
    %36 = tpu.matmul %35, %22, %cst_11 {dimension_numbers = #tpu.dot_dimension_numbers<[1], [0], [0], [1], [0, 0, 1, 1], [], []>} : vector<16x96xbf16>, vector<96x32xbf16>, vector<16x32xf32> -> vector<16x32xf32>
    %37 = vector.broadcast %23 : vector<1x32xf32> to vector<16x32xf32>
    %38 = arith.addf %36, %37 : vector<16x32xf32>
    %c0_12 = arith.constant 0 : index
    %c0_13 = arith.constant 0 : index
    %39 = vector.load %arg3[%c0_12, %c0_13] : memref<1x32xf32, #tpu.memory_space<vmem>>, vector<1x32xf32>
    %c0_14 = arith.constant 0 : index
    %c0_15 = arith.constant 0 : index
    %40 = vector.load %arg4[%c0_14, %c0_15] : memref<1x32xf32, #tpu.memory_space<vmem>>, vector<1x32xf32>
    %cst_16 = arith.constant dense<0.000000e+00> : vector<16xf32>
    %41 = vector.multi_reduction <add>, %38, %cst_16 [1] : vector<16x32xf32> to vector<16xf32>
    %42 = vector.shape_cast %41 : vector<16xf32> to vector<16x1xf32>
    %cst_17 = arith.constant 3.200000e+01 : f32
    %43 = vector.broadcast %cst_17 : f32 to vector<16x1xf32>
    %44 = arith.divf %42, %43 : vector<16x1xf32>
    %45 = vector.broadcast %44 : vector<16x1xf32> to vector<16x32xf32>
    %46 = arith.subf %38, %45 : vector<16x32xf32>
    %47 = arith.mulf %46, %46 : vector<16x32xf32>
    %cst_18 = arith.constant dense<0.000000e+00> : vector<16xf32>
    %48 = vector.multi_reduction <add>, %47, %cst_18 [1] : vector<16x32xf32> to vector<16xf32>
    %49 = vector.shape_cast %48 : vector<16xf32> to vector<16x1xf32>
    %cst_19 = arith.constant 3.200000e+01 : f32
    %50 = vector.broadcast %cst_19 : f32 to vector<16x1xf32>
    %51 = arith.divf %49, %50 : vector<16x1xf32>
    %cst_20 = arith.constant 9.99999974E-6 : f32
    %52 = vector.broadcast %cst_20 : f32 to vector<16x1xf32>
    %53 = arith.addf %51, %52 : vector<16x1xf32>
    %54 = math.rsqrt %53 : vector<16x1xf32>
    %55 = vector.broadcast %44 : vector<16x1xf32> to vector<16x32xf32>
    %56 = arith.subf %38, %55 : vector<16x32xf32>
    %57 = vector.broadcast %54 : vector<16x1xf32> to vector<16x32xf32>
    %58 = arith.mulf %56, %57 : vector<16x32xf32>
    %59 = vector.broadcast %39 : vector<1x32xf32> to vector<16x32xf32>
    %60 = arith.mulf %58, %59 : vector<16x32xf32>
    %61 = vector.broadcast %40 : vector<1x32xf32> to vector<16x32xf32>
    %62 = arith.addf %60, %61 : vector<16x32xf32>
    %cst_21 = arith.constant 0.000000e+00 : f32
    %63 = vector.broadcast %cst_21 : f32 to vector<16x32xf32>
    %64 = arith.maximumf %62, %63 : vector<16x32xf32>
    %c0_22 = arith.constant 0 : index
    %c0_23 = arith.constant 0 : index
    %65 = vector.load %arg5[%c0_22, %c0_23] : memref<96x32xbf16, #tpu.memory_space<vmem>>, vector<96x32xbf16>
    %c0_24 = arith.constant 0 : index
    %c0_25 = arith.constant 0 : index
    %66 = vector.load %arg6[%c0_24, %c0_25] : memref<1x32xf32, #tpu.memory_space<vmem>>, vector<1x32xf32>
    %c1_i32_26 = arith.constant 1 : i32
    %67 = tpu.dynamic_rotate %64 by %c1_i32_26 dim 0 : vector<16x32xf32>, i32 -> vector<16x32xf32>
    %cst_27 = arith.constant 0.000000e+00 : f32
    %68 = vector.shape_cast %19 : vector<16x1xi1> to vector<16x1xi1>
    %69 = vector.broadcast %68 : vector<16x1xi1> to vector<16x32xi1>
    %70 = vector.broadcast %cst_27 : f32 to vector<16x32xf32>
    %71 = arith.select %69, %70, %67 : vector<16x32xi1>, vector<16x32xf32>
    %c15_i32_28 = arith.constant 15 : i32
    %72 = tpu.dynamic_rotate %64 by %c15_i32_28 dim 0 : vector<16x32xf32>, i32 -> vector<16x32xf32>
    %cst_29 = arith.constant 0.000000e+00 : f32
    %73 = vector.shape_cast %21 : vector<16x1xi1> to vector<16x1xi1>
    %74 = vector.broadcast %73 : vector<16x1xi1> to vector<16x32xi1>
    %75 = vector.broadcast %cst_29 : f32 to vector<16x32xf32>
    %76 = arith.select %74, %75, %72 : vector<16x32xi1>, vector<16x32xf32>
    %77 = tpu.concatenate %71, %64, %76 in 1 : vector<16x32xf32>, vector<16x32xf32>, vector<16x32xf32> -> vector<16x96xf32>
    %78 = arith.truncf %77 : vector<16x96xf32> to vector<16x96xbf16>
    %cst_30 = arith.constant dense<0.000000e+00> : vector<16x32xf32>
    %79 = tpu.matmul %78, %65, %cst_30 {dimension_numbers = #tpu.dot_dimension_numbers<[1], [0], [0], [1], [0, 0, 1, 1], [], []>} : vector<16x96xbf16>, vector<96x32xbf16>, vector<16x32xf32> -> vector<16x32xf32>
    %80 = vector.broadcast %66 : vector<1x32xf32> to vector<16x32xf32>
    %81 = arith.addf %79, %80 : vector<16x32xf32>
    %c0_31 = arith.constant 0 : index
    %c0_32 = arith.constant 0 : index
    %82 = vector.load %arg7[%c0_31, %c0_32] : memref<1x32xf32, #tpu.memory_space<vmem>>, vector<1x32xf32>
    %c0_33 = arith.constant 0 : index
    %c0_34 = arith.constant 0 : index
    %83 = vector.load %arg8[%c0_33, %c0_34] : memref<1x32xf32, #tpu.memory_space<vmem>>, vector<1x32xf32>
    %cst_35 = arith.constant dense<0.000000e+00> : vector<16xf32>
    %84 = vector.multi_reduction <add>, %81, %cst_35 [1] : vector<16x32xf32> to vector<16xf32>
    %85 = vector.shape_cast %84 : vector<16xf32> to vector<16x1xf32>
    %cst_36 = arith.constant 3.200000e+01 : f32
    %86 = vector.broadcast %cst_36 : f32 to vector<16x1xf32>
    %87 = arith.divf %85, %86 : vector<16x1xf32>
    %88 = vector.broadcast %87 : vector<16x1xf32> to vector<16x32xf32>
    %89 = arith.subf %81, %88 : vector<16x32xf32>
    %90 = arith.mulf %89, %89 : vector<16x32xf32>
    %cst_37 = arith.constant dense<0.000000e+00> : vector<16xf32>
    %91 = vector.multi_reduction <add>, %90, %cst_37 [1] : vector<16x32xf32> to vector<16xf32>
    %92 = vector.shape_cast %91 : vector<16xf32> to vector<16x1xf32>
    %cst_38 = arith.constant 3.200000e+01 : f32
    %93 = vector.broadcast %cst_38 : f32 to vector<16x1xf32>
    %94 = arith.divf %92, %93 : vector<16x1xf32>
    %cst_39 = arith.constant 9.99999974E-6 : f32
    %95 = vector.broadcast %cst_39 : f32 to vector<16x1xf32>
    %96 = arith.addf %94, %95 : vector<16x1xf32>
    %97 = math.rsqrt %96 : vector<16x1xf32>
    %98 = vector.broadcast %87 : vector<16x1xf32> to vector<16x32xf32>
    %99 = arith.subf %81, %98 : vector<16x32xf32>
    %100 = vector.broadcast %97 : vector<16x1xf32> to vector<16x32xf32>
    %101 = arith.mulf %99, %100 : vector<16x32xf32>
    %102 = vector.broadcast %82 : vector<1x32xf32> to vector<16x32xf32>
    %103 = arith.mulf %101, %102 : vector<16x32xf32>
    %104 = vector.broadcast %83 : vector<1x32xf32> to vector<16x32xf32>
    %105 = arith.addf %103, %104 : vector<16x32xf32>
    %cst_40 = arith.constant 0.000000e+00 : f32
    %106 = vector.broadcast %cst_40 : f32 to vector<16x32xf32>
    %107 = arith.maximumf %105, %106 : vector<16x32xf32>
    %c0_41 = arith.constant 0 : index
    %c0_42 = arith.constant 0 : index
    %108 = vector.load %arg9[%c0_41, %c0_42] : memref<1x32xf32, #tpu.memory_space<vmem>>, vector<1x32xf32>
    %cst_43 = arith.constant dense<0.000000e+00> : vector<1x16xf32>
    %109 = tpu.matmul %108, %107, %cst_43 {dimension_numbers = #tpu.dot_dimension_numbers<[1], [1], [0], [0], [0, 0, 1, 0], [], []>} : vector<1x32xf32>, vector<16x32xf32>, vector<1x16xf32> -> vector<1x16xf32>
    %c0_44 = arith.constant 0 : index
    %c0_45 = arith.constant 0 : index
    %110 = vector.load %arg10[%c0_44, %c0_45] : memref<1x1xf32, #tpu.memory_space<vmem>>, vector<1x1xf32>
    %111 = vector.broadcast %110 : vector<1x1xf32> to vector<1x16xf32>
    %112 = arith.addf %109, %111 : vector<1x16xf32>
    %cst_46 = arith.constant 0.000000e+00 : f32
    %113 = vector.broadcast %cst_46 : f32 to vector<1x16xf32>
    %114 = arith.maximumf %112, %113 : vector<1x16xf32>
    %c0_47 = arith.constant 0 : index
    %c0_48 = arith.constant 0 : index
    %115 = vector.load %arg11[%c0_47, %c0_48] : memref<1x16xf32, #tpu.memory_space<vmem>>, vector<1x16xf32>
    tpu.vector_store %arg11[%c0_47, %c0_48], %114 {strides = array<i32>} : memref<1x16xf32, #tpu.memory_space<vmem>>, vector<1x16xf32>,
    return
  }
}

</mosaic_0001>

<llo_original>
// kernel: tpu_custom_call.1
$region0: #{tpu_custom_call.1}
  #allocation0 [shape = 'u32[]', space=smem, size = 0x4, offset = 0x4, fixed_abs, tag = 'smem constant byte address 0x4 - core index']
  #allocation1 [shape = 'u32[72,128]{1,0:T(1,128)}', space=vmem, size = 0x9000, scoped, tag = 'internal scratch']
  #allocation2 [shape = 'f32[1,1]{1,0:T(1,128)S(1)}', space=vmem, size = 0x200, scoped, tag = 'scoped memory for tpu_custom_call.1']
  %s0 = inlined_call_operand.vmem [shape: f32[16,32], index: 0, kind: input, shape index: {}]
  %s1 = inlined_call_operand.vmem [shape: bf16[96,32], index: 1, kind: input, shape index: {}]
  %s2 = inlined_call_operand.vmem [shape: f32[1,32], index: 2, kind: input, shape index: {}]
  %s3 = inlined_call_operand.vmem [shape: f32[1,32], index: 3, kind: input, shape index: {}]
  %s4 = inlined_call_operand.vmem [shape: f32[1,32], index: 4, kind: input, shape index: {}]
  %s5 = inlined_call_operand.vmem [shape: bf16[96,32], index: 5, kind: input, shape index: {}]
  %s6 = inlined_call_operand.vmem [shape: f32[1,32], index: 6, kind: input, shape index: {}]
  %s7 = inlined_call_operand.vmem [shape: f32[1,32], index: 7, kind: input, shape index: {}]
  %s8 = inlined_call_operand.vmem [shape: f32[1,32], index: 8, kind: input, shape index: {}]
  %s9 = inlined_call_operand.vmem [shape: f32[1,32], index: 9, kind: input, shape index: {}]
  %s10 = inlined_call_operand.<no memory space> [shape: f32[1,1], index: 10, kind: input, shape index: {}]
  %s11 = inlined_call_operand.hbm [shape: f32[1,16], index: 11, kind: output, shape index: {}]
  %s12 = sld [smem:[#allocation0]]
  $region54: #{tpu_custom_call.1} parent=0
    _
  %s14 = ssub.s32 1, %s12
  %s15 = scalar_select 0, %s14, %s12
  %v16 = vstv %s10
  %17 = vst [vmem:[#allocation2] sm:$0x1] %v16
  $region1: #{tpu_custom_call.1} parent=0
    #allocation3 [shape = 'u8[512]{0}', space=vmem, size = 0x400, scoped, tag = 'output window, operand 0, single buffered']
    #allocation4 [shape = 's32[1]{0}', space=sflag, size = 0x4, scoped, tag = 'scoped memory for tpu_custom_call.1']
    %18 = vsyncpa [#allocation4], 0
    // Predicated region
    $region2: #{tpu_custom_call.1} parent=1 // pred_check
      _
    $region3: #{tpu_custom_call.1} parent=1 // pred_check_branch
      %20 = sbr.rel (0) target = $region5
    $region4: #{tpu_custom_call.1} parent=1 // pred_region
      _
    $region5: #{tpu_custom_call.1} parent=1 // pred_fallthru
      _
    // Predicated region
    $region6: #{tpu_custom_call.1} parent=1 // pred_check
      _
    $region7: #{tpu_custom_call.1} parent=1 // pred_check_branch
      %22 = sbr.rel (0) target = $region9
    $region8: #{tpu_custom_call.1} parent=1 // pred_region
      _
    $region9: #{tpu_custom_call.1} parent=1 // pred_fallthru
      _
    // Predicated region
    $region10: #{tpu_custom_call.1} parent=1 // pred_check
      _
    $region11: #{tpu_custom_call.1} parent=1 // pred_check_branch
      %24 = sbr.rel (0) target = $region13
    $region12: #{tpu_custom_call.1} parent=1 // pred_region
      _
    $region13: #{tpu_custom_call.1} parent=1 // pred_fallthru
      _
    // Predicated region
    $region14: #{tpu_custom_call.1} parent=1 // pred_check
      _
    $region15: #{tpu_custom_call.1} parent=1 // pred_check_branch
      %26 = sbr.rel (0) target = $region17
    $region16: #{tpu_custom_call.1} parent=1 // pred_region
      _
    $region17: #{tpu_custom_call.1} parent=1 // pred_fallthru
      _
    // Predicated region
    $region18: #{tpu_custom_call.1} parent=1 // pred_check
      _
    $region19: #{tpu_custom_call.1} parent=1 // pred_check_branch
      %28 = sbr.rel (0) target = $region21
    $region20: #{tpu_custom_call.1} parent=1 // pred_region
      _
    $region21: #{tpu_custom_call.1} parent=1 // pred_fallthru
      _
    // Predicated region
    $region22: #{tpu_custom_call.1} parent=1 // pred_check
      _
    $region23: #{tpu_custom_call.1} parent=1 // pred_check_branch
      %30 = sbr.rel (0) target = $region25
    $region24: #{tpu_custom_call.1} parent=1 // pred_region
      _
    $region25: #{tpu_custom_call.1} parent=1 // pred_fallthru
      _
    // Predicated region
    $region26: #{tpu_custom_call.1} parent=1 // pred_check
      _
    $region27: #{tpu_custom_call.1} parent=1 // pred_check_branch
      %32 = sbr.rel (0) target = $region29
    $region28: #{tpu_custom_call.1} parent=1 // pred_region
      _
    $region29: #{tpu_custom_call.1} parent=1 // pred_fallthru
      _
    // Predicated region
    $region30: #{tpu_custom_call.1} parent=1 // pred_check
      _
    $region31: #{tpu_custom_call.1} parent=1 // pred_check_branch
      %34 = sbr.rel (0) target = $region33
    $region32: #{tpu_custom_call.1} parent=1 // pred_region
      _
    $region33: #{tpu_custom_call.1} parent=1 // pred_fallthru
      _
    // Predicated region
    $region34: #{tpu_custom_call.1} parent=1 // pred_check
      _
    $region35: #{tpu_custom_call.1} parent=1 // pred_check_branch
      %36 = sbr.rel (0) target = $region37
    $region36: #{tpu_custom_call.1} parent=1 // pred_region
      _
    $region37: #{tpu_custom_call.1} parent=1 // pred_fallthru
      _
    // Predicated region
    $region38: #{tpu_custom_call.1} parent=1 // pred_check
      _
    $region39: #{tpu_custom_call.1} parent=1 // pred_check_branch
      %38 = sbr.rel (0) target = $region41
    $region40: #{tpu_custom_call.1} parent=1 // pred_region
      _
    $region41: #{tpu_custom_call.1} parent=1 // pred_fallthru
      _
    // Predicated region
    $region42: #{tpu_custom_call.1} parent=1 // pred_check
      _
    $region43: #{tpu_custom_call.1} parent=1 // pred_check_branch
      %40 = sbr.rel (0) target = $region45
    $region44: #{tpu_custom_call.1} parent=1 // pred_region
      _
    $region45: #{tpu_custom_call.1} parent=1 // pred_fallthru
      _
    %v42 = vld [vmem:[%s0] sm:$0xff]
    %v43 = vld [vmem:[%s0 + $0x8] sm:$0xff]
    %v44 = vlaneseq
    %v45 = vshrl.u32 %v44, 7
    %v46 = vadd.s32 %v45, 8
    %vm47 = vcmp.lt.s32.totalorder %v45, 0
    %v48 = vsub.s32 0, %v45
    %v49 = vsel %vm47, %v48, %v45
    %v50 = vshrl.u32 %v49, 3
    %v51 = vand.u32 %v49, 7
    %v52 = vsub.s32 0, %v51
    %v53 = vsel %vm47, %v52, %v51
    %vm54 = vcmp.lt.s32.totalorder %v46, 0
    %v55 = vsub.s32 0, %v46
    %v56 = vsel %vm54, %v55, %v46
    %v57 = vshrl.u32 %v56, 3
    %v58 = vand.u32 %v56, 7
    %v59 = vsub.s32 0, %v58
    %v60 = vsel %vm54, %v59, %v58
    %vm61 = vcmp.ne.s32.totalorder %v53, 0
    %vm62 = vcmp.ne.s32.totalorder %v60, 0
    %vm63 = vcmp.lt.s32.totalorder %v53, 0
    %vm64 = vcmp.lt.s32.totalorder %v60, 0
    %vm65 = vmand %vm63, %vm61
    %vm66 = vmand %vm64, %vm62
    %v67 = vadd.s32 %v53, 8
    %v68 = vadd.s32 %v60, 8
    %v69 = vsel %vm65, %v67, %v53
    %v70 = vsel %vm66, %v68, %v60
    %vm71 = vcmp.eq.s32.totalorder %v69, 0
    %vm72 = vcmp.eq.s32.totalorder %v70, 0
    %vm73 = vcmp.eq.s32.totalorder %v69, 7
    %vm74 = vcmp.eq.s32.totalorder %v70, 7
    %v75 = vld [vmem:[%s1] sm:$0xf]
    %v76 = vld [vmem:[%s1 + $0x4] sm:$0xf]
    %v77 = vld [vmem:[%s1 + $0x8] sm:$0xf]
    %v78 = vld [vmem:[%s1 + $0xc] sm:$0xf]
    %v79 = vld [vmem:[%s1 + $0x10] sm:$0xf]
    %v80 = vld [vmem:[%s1 + $0x14] sm:$0xf]
    %v81 = vld [vmem:[%s1 + $0x18] sm:$0xf]
    %v82 = vld [vmem:[%s1 + $0x1c] sm:$0xf]
    %v83 = vld [vmem:[%s1 + $0x20] sm:$0xf]
    %v84 = vld [vmem:[%s1 + $0x24] sm:$0xf]
    %v85 = vld [vmem:[%s1 + $0x28] sm:$0xf]
    %v86 = vld [vmem:[%s1 + $0x2c] sm:$0xf]
    %v87 = vld [vmem:[%s2] sm:$0x1]
    %v88 = vrot.slane %v42, 7
    %v89 = vrot.slane %v43, 7
    %vm90 = vcmp.lt.s32.totalorder %v45, 1
    %v91 = vsel %vm90, %v88, %v89
    %v92 = vsel %vm90, %v89, %v88
    %v93 = vsel %vm71, 1, 0
    %v94 = vsel %vm72, 1, 0
    %vm95 = vcmp.eq.s32.totalorder %v93, 1
    %vm96 = vcmp.eq.s32.totalorder %v94, 1
    %v97 = vsel %vm95, 0.0, %v92
    %v98 = vsel %vm96, 0.0, %v91
    %v99 = vrot.slane %v42, 1
    %v100 = vrot.slane %v43, 1
    %vm101 = vcmp.lt.s32.totalorder %v45, 7
    %v102 = vsel %vm101, %v99, %v100
    %v103 = vsel %vm101, %v100, %v99
    %v104 = vsel %vm73, 1, 0
    %v105 = vsel %vm74, 1, 0
    %vm106 = vcmp.eq.s32.totalorder %v104, 1
    %vm107 = vcmp.eq.s32.totalorder %v105, 1
    %v108 = vsel %vm106, 0.0, %v102
    %v109 = vsel %vm107, 0.0, %v103
    %112 = vrot.lane.b32.xlu0 %v42, 32
    %v113 = vpop.permute.xlu0 %112
    %114 = vrot.lane.b32.xlu0 %v43, 32
    %v115 = vpop.permute.xlu0 %114
    %120 = vrot.lane.b32.xlu0 %v108, 64
    %v121 = vpop.permute.xlu0 %120
    %122 = vrot.lane.b32.xlu0 %v109, 64
    %v123 = vpop.permute.xlu0 %122
    %vm126 = vcmask 261120
    %v127 = vsel %vm126, %v97, %v113
    %v128 = vsel %vm126, %v98, %v115
    %vm129 = vcmask 523264
    %v130 = vsel %vm129, %v127, %v121
    %v131 = vsel %vm129, %v128, %v123
    %v132 = vpack.c.bf16 %v131, %v130
    %v134 = vperm.slane %v87, 0
    %v148 = vunpack.c.l.b16 %v75
    %v149 = vunpack.c.l.b16 %v76
    %v150 = vunpack.c.l.b16 %v77
    %v151 = vunpack.c.l.b16 %v78
    %v152 = vunpack.c.l.b16 %v79
    %v153 = vunpack.c.l.b16 %v80
    %v154 = vunpack.c.l.b16 %v81
    %v155 = vunpack.c.l.b16 %v82
    %v156 = vunpack.c.l.b16 %v83
    %v157 = vunpack.c.l.b16 %v84
    %v158 = vunpack.c.l.b16 %v85
    %v159 = vunpack.c.l.b16 %v86
    %v160 = vpack.c.b16 %v149, %v148
    %v161 = vpack.c.b16 %v151, %v150
    %v162 = vpack.c.b16 %v153, %v152
    %v163 = vpack.c.b16 %v155, %v154
    %v164 = vpack.c.b16 %v157, %v156
    %v165 = vpack.c.b16 %v159, %v158
    %vm172 = vcmask 785408
    %v174 = vsel %vm172, %v132, 0
    %176 = vmatpush.bf16.msra.mxu0 0
    %177 = vmatpush.bf16.msra.mxu0 0
    %178 = vmatpush.bf16.msra.mxu0 %v165
    %179 = vmatpush.bf16.msra.mxu0 %v164
    %180 = vmatpush.bf16.msra.mxu0 %v163
    %181 = vmatpush.bf16.msra.mxu0 %v162
    %182 = vmatpush.bf16.msra.mxu0 %v161
    %183 = vmatpush.bf16.msra.mxu0 %v160
    %184 = vmatmul.bf16.gmra.mxu0 %v174
    %v185 = vpop.f32.mrf.mxu0
    %v186 = vadd.f32 %v134, %v185
    %v187 = vpop.f32.mrf.mxu0
    %v188 = vadd.f32 %v134, %v187
    %189 = vdwg.mxu0
    %v190 = vld [vmem:[%s3] sm:$0x1]
    %v191 = vld [vmem:[%s4] sm:$0x1]
    %v192 = vsel %vm126, %v186, 0.0
    %193 = vadd.xlane.f32.xlu0 %v192
    %v194 = vpop.xlane.xlu0 %193
    %v195 = vsel %vm126, %v188, 0.0
    %196 = vadd.xlane.f32.xlu0 %v195
    %v197 = vpop.xlane.xlu0 %196
    %v198 = vrcp.pop 32.0
    %v199 = vmul.f32 32.0, %v198
    %v200 = vsub.f32 1.0, %v199
    %v201 = vmul.f32 %v198, %v200
    %v202 = vadd.f32 %v198, %v201
    %vm203 = vweird.f32 %v198
    %v204 = vsel %vm203, %v198, %v202
    %v205 = vmul.f32 %v194, %v204
    %v206 = vmul.f32 %v197, %v204
    %v207 = vsub.f32 %v186, %v205
    %v208 = vsub.f32 %v188, %v206
    %v209 = vmul.f32 %v207, %v207
    %v210 = vmul.f32 %v208, %v208
    %v211 = vsel %vm126, %v209, 0.0
    %212 = vadd.xlane.f32.xlu0 %v211
    %v213 = vpop.xlane.xlu0 %212
    %v214 = vsel %vm126, %v210, 0.0
    %215 = vadd.xlane.f32.xlu0 %v214
    %v216 = vpop.xlane.xlu0 %215
    %v217 = vmul.f32 %v213, %v204
    %v218 = vmul.f32 %v216, %v204
    %v219 = vadd.f32 %v217, 1e-05
    %v220 = vadd.f32 %v218, 1e-05
    %v221 = vrsqrt.pop %v219
    %v222 = vmul.f32 %v221, %v219
    %v223 = vmul.f32 %v222, %v221
    %v224 = vmul.f32 0.5, %v223
    %v225 = vsub.f32 1.5, %v224
    %v226 = vmul.f32 %v221, %v225
    %vm227 = vweird.f32 %v219
    %vm228 = vweird.f32 %v221
    %vm229 = vmor %vm227, %vm228
    %v230 = vsel %vm229, %v221, %v226
    %v231 = vrsqrt.pop %v220
    %v232 = vmul.f32 %v231, %v220
    %v233 = vmul.f32 %v232, %v231
    %v234 = vmul.f32 0.5, %v233
    %v235 = vsub.f32 1.5, %v234
    %v236 = vmul.f32 %v231, %v235
    %vm237 = vweird.f32 %v220
    %vm238 = vweird.f32 %v231
    %vm239 = vmor %vm237, %vm238
    %v240 = vsel %vm239, %v231, %v236
    %v241 = vmul.f32 %v207, %v230
    %v242 = vmul.f32 %v208, %v240
    %v244 = vperm.slane %v190, 0
    %v246 = vmul.f32 %v241, %v244
    %v247 = vmul.f32 %v242, %v244
    %v249 = vperm.slane %v191, 0
    %v251 = vadd.f32 %v246, %v249
    %v252 = vadd.f32 %v247, %v249
    %v253 = vmax.f32 %v251, 0.0
    %v254 = vmax.f32 %v252, 0.0
    %v255 = vld [vmem:[%s5] sm:$0xf]
    %v256 = vld [vmem:[%s5 + $0x4] sm:$0xf]
    %v257 = vld [vmem:[%s5 + $0x8] sm:$0xf]
    %v258 = vld [vmem:[%s5 + $0xc] sm:$0xf]
    %v259 = vld [vmem:[%s5 + $0x10] sm:$0xf]
    %v260 = vld [vmem:[%s5 + $0x14] sm:$0xf]
    %v261 = vld [vmem:[%s5 + $0x18] sm:$0xf]
    %v262 = vld [vmem:[%s5 + $0x1c] sm:$0xf]
    %v263 = vld [vmem:[%s5 + $0x20] sm:$0xf]
    %v264 = vld [vmem:[%s5 + $0x24] sm:$0xf]
    %v265 = vld [vmem:[%s5 + $0x28] sm:$0xf]
    %v266 = vld [vmem:[%s5 + $0x2c] sm:$0xf]
    %v267 = vld [vmem:[%s6] sm:$0x1]
    %v268 = vrot.slane %v253, 7
    %v269 = vrot.slane %v254, 7
    %v270 = vsel %vm90, %v268, %v269
    %v271 = vsel %vm90, %v269, %v268
    %v272 = vsel %vm95, 0.0, %v271
    %v273 = vsel %vm96, 0.0, %v270
    %v274 = vrot.slane %v253, 1
    %v275 = vrot.slane %v254, 1
    %v276 = vsel %vm101, %v274, %v275
    %v277 = vsel %vm101, %v275, %v274
    %v278 = vsel %vm106, 0.0, %v276
    %v279 = vsel %vm107, 0.0, %v277
    %282 = vrot.lane.b32.xlu0 %v253, 32
    %v283 = vpop.permute.xlu0 %282
    %284 = vrot.lane.b32.xlu0 %v254, 32
    %v285 = vpop.permute.xlu0 %284
    %290 = vrot.lane.b32.xlu0 %v278, 64
    %v291 = vpop.permute.xlu0 %290
    %292 = vrot.lane.b32.xlu0 %v279, 64
    %v293 = vpop.permute.xlu0 %292
    %v296 = vsel %vm126, %v272, %v283
    %v297 = vsel %vm126, %v273, %v285
    %v298 = vsel %vm129, %v296, %v291
    %v299 = vsel %vm129, %v297, %v293
    %v300 = vpack.c.bf16 %v299, %v298
    %v302 = vperm.slane %v267, 0
    %v316 = vunpack.c.l.b16 %v255
    %v317 = vunpack.c.l.b16 %v256
    %v318 = vunpack.c.l.b16 %v257
    %v319 = vunpack.c.l.b16 %v258
    %v320 = vunpack.c.l.b16 %v259
    %v321 = vunpack.c.l.b16 %v260
    %v322 = vunpack.c.l.b16 %v261
    %v323 = vunpack.c.l.b16 %v262
    %v324 = vunpack.c.l.b16 %v263
    %v325 = vunpack.c.l.b16 %v264
    %v326 = vunpack.c.l.b16 %v265
    %v327 = vunpack.c.l.b16 %v266
    %v328 = vpack.c.b16 %v317, %v316
    %v329 = vpack.c.b16 %v319, %v318
    %v330 = vpack.c.b16 %v321, %v320
    %v331 = vpack.c.b16 %v323, %v322
    %v332 = vpack.c.b16 %v325, %v324
    %v333 = vpack.c.b16 %v327, %v326
    %v341 = vsel %vm172, %v300, 0
    %343 = vmatpush.bf16.msra.mxu0 0
    %344 = vmatpush.bf16.msra.mxu0 0
    %345 = vmatpush.bf16.msra.mxu0 %v333
    %346 = vmatpush.bf16.msra.mxu0 %v332
    %347 = vmatpush.bf16.msra.mxu0 %v331
    %348 = vmatpush.bf16.msra.mxu0 %v330
    %349 = vmatpush.bf16.msra.mxu0 %v329
    %350 = vmatpush.bf16.msra.mxu0 %v328
    %351 = vmatmul.bf16.gmra.mxu0 %v341
    %v352 = vpop.f32.mrf.mxu0
    %v353 = vadd.f32 %v302, %v352
    %v354 = vpop.f32.mrf.mxu0
    %v355 = vadd.f32 %v302, %v354
    %356 = vdwg.mxu0
    %v357 = vld [vmem:[%s7] sm:$0x1]
    %v358 = vld [vmem:[%s8] sm:$0x1]
    %v359 = vsel %vm126, %v353, 0.0
    %360 = vadd.xlane.f32.xlu0 %v359
    %v361 = vpop.xlane.xlu0 %360
    %v362 = vsel %vm126, %v355, 0.0
    %363 = vadd.xlane.f32.xlu0 %v362
    %v364 = vpop.xlane.xlu0 %363
    %v365 = vmul.f32 %v361, %v204
    %v366 = vmul.f32 %v364, %v204
    %v367 = vsub.f32 %v353, %v365
    %v368 = vsub.f32 %v355, %v366
    %v369 = vmul.f32 %v367, %v367
    %v370 = vmul.f32 %v368, %v368
    %v371 = vsel %vm126, %v369, 0.0
    %372 = vadd.xlane.f32.xlu0 %v371
    %v373 = vpop.xlane.xlu0 %372
    %v374 = vsel %vm126, %v370, 0.0
    %375 = vadd.xlane.f32.xlu0 %v374
    %v376 = vpop.xlane.xlu0 %375
    %v377 = vmul.f32 %v373, %v204
    %v378 = vmul.f32 %v376, %v204
    %v379 = vadd.f32 %v377, 1e-05
    %v380 = vadd.f32 %v378, 1e-05
    %v381 = vrsqrt.pop %v379
    %v382 = vmul.f32 %v381, %v379
    %v383 = vmul.f32 %v382, %v381
    %v384 = vmul.f32 0.5, %v383
    %v385 = vsub.f32 1.5, %v384
    %v386 = vmul.f32 %v381, %v385
    %vm387 = vweird.f32 %v379
    %vm388 = vweird.f32 %v381
    %vm389 = vmor %vm387, %vm388
    %v390 = vsel %vm389, %v381, %v386
    %v391 = vrsqrt.pop %v380
    %v392 = vmul.f32 %v391, %v380
    %v393 = vmul.f32 %v392, %v391
    %v394 = vmul.f32 0.5, %v393
    %v395 = vsub.f32 1.5, %v394
    %v396 = vmul.f32 %v391, %v395
    %vm397 = vweird.f32 %v380
    %vm398 = vweird.f32 %v391
    %vm399 = vmor %vm397, %vm398
    %v400 = vsel %vm399, %v391, %v396
    %v401 = vmul.f32 %v367, %v390
    %v402 = vmul.f32 %v368, %v400
    %v404 = vperm.slane %v357, 0
    %v406 = vmul.f32 %v401, %v404
    %v407 = vmul.f32 %v402, %v404
    %v409 = vperm.slane %v358, 0
    %v411 = vadd.f32 %v406, %v409
    %v412 = vadd.f32 %v407, %v409
    %v413 = vmax.f32 %v411, 0.0
    %v414 = vmax.f32 %v412, 0.0
    %v415 = vld [vmem:[%s9] sm:$0x1]
    %v416 = vld [vmem:[#allocation2] sm:$0x1]
    %418 = vset.pattern.permute.xlu0 0
    %419 = vperm.xlu0 %418, %v416
    %v420 = vpop.permute.xlu0 %419
    %v422 = vperm.slane %v420, 0
    %v424 = vsel %vm126, %v415, 0
    %v427 = vsel %vm126, %v413, 0
    %v430 = vsel %vm126, %v414, 0
    %432 = vmatpush.xpose.msra.mxu0 0.0
    %433 = vmatpush.xpose.msra.mxu0 0.0
    %434 = vmatpush.xpose.msra.mxu0 0.0
    %435 = vmatpush.xpose.msra.mxu0 0.0
    %436 = vmatpush.xpose.msra.mxu0 0.0
    %437 = vmatpush.xpose.msra.mxu0 0.0
    %438 = vmatpush.xpose.msra.mxu0 0.0
    %439 = vmatpush.xpose.msra.mxu0 0.0
    %440 = vmatpush.xpose.msra.mxu0 0.0
    %441 = vmatpush.xpose.msra.mxu0 0.0
    %442 = vmatpush.xpose.msra.mxu0 0.0
    %443 = vmatpush.xpose.msra.mxu0 0.0
    %444 = vmatpush.xpose.msra.mxu0 0.0
    %445 = vmatpush.xpose.msra.mxu0 0.0
    %446 = vmatpush.xpose.msra.mxu0 %v430
    %447 = vmatpush.xpose.msra.mxu0 %v427
    %448 = vmatmul.f32.gmra.mxu0 %v424
    %v449 = vpop.f32.mrf.mxu0
    %v450 = vadd.f32 %v422, %v449
    %451 = vdwg.mxu0
    %v452 = vmax.f32 %v450, 0.0
    %vm453 = vcmask 122880
    %454 = vst.msk [vmem:[#allocation3] sm:$0x1] %vm453, %v452
    // Predicated region
    $region46: #{tpu_custom_call.1} parent=1 // pred_check
      _
    $region47: #{tpu_custom_call.1} parent=1 // pred_check_branch
      %456 = sbr.rel (0) target = $region49
    $region48: #{tpu_custom_call.1} parent=1 // pred_region
      %458 = vsyncadd [#allocation4], 0
      %s460 = sshll.u32 [#allocation3], 4
      %s461 = int_to_ptr.vmem [resolvable:$true] %s460
      %s462 = sshll.u32 %s11, 4
      %s463 = int_to_ptr.hbm [resolvable:$true] %s462
      %465 = dma.vmem_to_hbm [thread:$0]  %s461, 16, %s463, [#allocation4]
    $region49: #{tpu_custom_call.1} parent=1 // pred_fallthru
      _
    // Predicated region
    $region50: #{tpu_custom_call.1} parent=1 // pred_check
      _
    $region51: #{tpu_custom_call.1} parent=1 // pred_check_branch
      %467 = sbr.rel (0) target = $region53
    $region52: #{tpu_custom_call.1} parent=1 // pred_region
      %469 = dma.done [#allocation4], 16
    $region53: #{tpu_custom_call.1} parent=1 // pred_fallthru
      _
    %470 = vsyncpa [#allocation4], 1

</llo_original>
